<compile_context>
chip_gen: v6e
topology: v6e:2x2x1
jax: 0.10.0
libtpu: 0.0.40
codegen_flags: <defaults>
</compile_context>

<pallas_src>
import jax
import jax.numpy as jnp
from jax.experimental import pallas as pl
from jax.experimental.pallas import tpu as pltpu

EPS = 2.2204e-16          # matches Loss_SAM3.eps
LANE = 128                # TPU lane width
RAD2DEG = 57.29577951308232
VMEM_LIMIT = 32 << 20     # explicit scoped-VMEM limit (<= physical on all gens)
VMEM_BUDGET = 22 << 20    # tile-sizing budget (leaves headroom under the limit)

# Abramowitz & Stegun 4.4.46: acos(x) = sqrt(1-x)*poly(x), 0<=x<=1, |err|<=2e-8 rad.
_ACOS_COEFFS = (1.5707963050, -0.2145988016, 0.0889789874, -0.0501743046,
                0.0308918810, -0.0170881256, 0.0066700901, -0.0012624911)


def _round_up(a, m):
    return -(-a // m) * m


def _acos_deg(x):
    """Elementwise degrees(acos(clip(x,-1,1))): VPU polynomial + one EUP sqrt."""
    x = jnp.clip(x, -1.0, 1.0)
    ax = jnp.abs(x)
    poly = jnp.float32(_ACOS_COEFFS[-1])
    for c in reversed(_ACOS_COEFFS[:-1]):
        poly = poly * ax + jnp.float32(c)
    r = jnp.sqrt(1.0 - ax) * poly
    r = jnp.where(x < 0.0, jnp.float32(jnp.pi) - r, r)
    return r * jnp.float32(RAD2DEG)


def _sam_from_channels(load_x, load_y, num_c):
    """Fused single-pass channel accumulation -> SAM angle (degrees)."""
    x0 = load_x(0)
    y0 = load_y(0)
    mole = x0 * y0
    sxx = x0 * x0
    syy = y0 * y0
    for c in range(1, num_c):          # small static C -> unrolled, no big temporaries
        xc = load_x(c)
        yc = load_y(c)
        mole = mole + xc * yc
        sxx = sxx + xc * xc
        syy = syy + yc * yc
    deno = jnp.sqrt(sxx) * jnp.sqrt(syy)      # two sqrts: no overflow of sxx*syy
    ratio = (mole + EPS) / (deno + EPS)
    return _acos_deg(ratio)


def _sam_kernel_4d(x_ref, y_ref, o_ref):
    # Fast path. x_ref, y_ref: (1, C, TSUB, LANE) VMEM tiles; o_ref: (1, TSUB, LANE).
    C = x_ref.shape[1]
    o_ref[0] = _sam_from_channels(
        lambda c: x_ref[0, c].astype(jnp.float32),
        lambda c: y_ref[0, c].astype(jnp.float32),
        C,
    )


def _sam_kernel_3d(x_ref, y_ref, o_ref):
    # Ragged-N fallback. x_ref, y_ref: (1, C, TN); o_ref: (1, 1, TN).
    x = x_ref[0].astype(jnp.float32)          # (C, TN) -- C is small
    y = y_ref[0].astype(jnp.float32)
    mole = jnp.sum(x * y, axis=0, keepdims=True)
    sxx = jnp.sum(x * x, axis=0, keepdims=True)
    syy = jnp.sum(y * y, axis=0, keepdims=True)
    deno = jnp.sqrt(sxx) * jnp.sqrt(syy)
    ratio = (mole + EPS) / (deno + EPS)
    o_ref[0] = _acos_deg(ratio)


def _choose_tsub(nb, c, itemsize, batch, budget=VMEM_BUDGET):
    """Sublane tile for the 4D path. Honest per-row VMEM accounting:
    2 inputs x 2 buffers + 2 output buffers + ~12 f32 temporary planes."""
    per_row = (2 * 2 * c * LANE * itemsize) + (2 * LANE * 4) + (12 * LANE * 4)
    t = max(8, (budget // per_row) // 8 * 8)
    if batch < 2 and nb > 8:
        # v7x has 2 TensorCores: keep at least 2 grid steps when B == 1.
        t = min(t, max(8, _round_up(pl.cdiv(nb, 2), 8)))
    if nb <= t:
        t = nb                                # full-extent block (exempt from x8 rule)
    return t


def _choose_tn(n, c, itemsize, batch, budget=VMEM_BUDGET):
    """Lane tile (multiple of 128) for the ragged-N fallback path."""
    per_lane = (2 * 2 * c * itemsize) + (2 * 4) + ((2 * c + 8) * 4)
    t = max(LANE, (budget // per_lane) // LANE * LANE)
    if batch < 2 and n > LANE:
        t = min(t, max(LANE, _round_up(pl.cdiv(n, 2), LANE)))
    if n <= t:
        t = n                                 # full-extent block
    return t


@jax.jit
def loss_sam3(im1, im2):
    """SAM angle in degrees per pixel. im1, im2: (B, C, H, W) -> (B, H*W) f32."""
    assert im1.shape == im2.shape
    B, C, H, W = im1.shape
    N = H * W
    itemsize = im1.dtype.itemsize

    x = im1.reshape(B, C, N)                  # free reshapes
    y = im2.reshape(B, C, N)

    cost = pl.CostEstimate(
        flops=int(B * N * (8 * C + 24)),
        transcendentals=int(3 * B * N),
        bytes_accessed=int(2 * B * C * N * itemsize + B * N * 4),
    )
    cparams = pltpu.CompilerParams(
        dimension_semantics=("parallel", "parallel"),
        vmem_limit_bytes=VMEM_LIMIT,
    )

    if N % LANE == 0:
        # Fast path: lane-major 4D layout -> channel reduction is plain VPU adds
        # over dense (8,128)-tiled planes; lane-dense output stores.
        NB = N // LANE
        x4 = x.reshape(B, C, NB, LANE)        # free reshape (N multiple of 128)
        y4 = y.reshape(B, C, NB, LANE)
        tsub = _choose_tsub(NB, C, itemsize, B)
        grid = (B, pl.cdiv(NB, tsub))
        in_spec = pl.BlockSpec((1, C, tsub, LANE), lambda b, n: (b, 0, n, 0))
        out_spec = pl.BlockSpec((1, tsub, LANE), lambda b, n: (b, n, 0))
        sam = pl.pallas_call(
            _sam_kernel_4d,
            out_shape=jax.ShapeDtypeStruct((B, NB, LANE), jnp.float32),
            grid_spec=pltpu.PrefetchScalarGridSpec(
                num_scalar_prefetch=0,
                grid=grid,
                in_specs=[in_spec, in_spec],
                out_specs=out_spec,
            ),
            compiler_params=cparams,
            cost_estimate=cost,
        )(x4, y4)
        return sam.reshape(B, N)

    # Ragged-N path: no jnp.pad / no slice copies. Block (B, C, N) directly along
    # the lane axis; boundary blocks are masked by Pallas.
    tn = _choose_tn(N, C, itemsize, B)
    grid = (B, pl.cdiv(N, tn))
    in_spec = pl.BlockSpec((1, C, tn), lambda b, n: (b, 0, n))
    out_spec = pl.BlockSpec((1, 1, tn), lambda b, n: (b, 0, n))
    sam = pl.pallas_call(
        _sam_kernel_3d,
        out_shape=jax.ShapeDtypeStruct((B, 1, N), jnp.float32),
        grid_spec=pltpu.PrefetchScalarGridSpec(
            num_scalar_prefetch=0,
            grid=grid,
            in_specs=[in_spec, in_spec],
            out_specs=out_spec,
        ),
        compiler_params=cparams,
        cost_estimate=cost,
    )(x, y)
    return sam.reshape(B, N)


def _reference_sam(im1, im2):
    """Pure-JAX reference mirroring the PyTorch forward (sanity check)."""
    B, C, H, W = im1.shape
    a = im1.reshape(B, C, -1).transpose(0, 2, 1).astype(jnp.float32)
    b = im2.reshape(B, C, -1).transpose(0, 2, 1).astype(jnp.float32)
    mole = jnp.sum(a * b, axis=2)
    deno = jnp.sqrt(jnp.sum(a * a, axis=2)) * jnp.sqrt(jnp.sum(b * b, axis=2))
    return jnp.degrees(jnp.arccos(jnp.clip((mole + EPS) / (deno + EPS), -1.0, 1.0)))


if __name__ == "__main__":
    key = jax.random.PRNGKey(0)
    k1, k2, k3, k4, k5, k6 = jax.random.split(key, 6)

    # Test 1: B=2, C=4, 16x16 spatial (N=256 -> fast 4D path, full-extent block).
    B, C, H, W = 2, 4, 16, 16
    im1 = jax.random.normal(k1, (B, C, H, W), dtype=jnp.float32)
    im2 = jax.random.normal(k2, (B, C, H, W), dtype=jnp.float32)
    out = jax.block_until_ready(loss_sam3(im1, im2))
    ref = jax.block_until_ready(_reference_sam(im1, im2))
    assert out.shape == (B, H * W), out.shape
    assert jnp.max(jnp.abs(out - ref)) < 1e-2, float(jnp.max(jnp.abs(out - ref)))

    # Test 2: ragged N (N=120, not a multiple of 128) with native bf16 inputs.
    im1b = jax.random.normal(k3, (2, 3, 10, 12), dtype=jnp.bfloat16)
    im2b = jax.random.normal(k4, (2, 3, 10, 12), dtype=jnp.bfloat16)
    outb = jax.block_until_ready(loss_sam3(im1b, im2b))
    refb = jax.block_until_ready(_reference_sam(im1b, im2b))
    assert outb.shape == (2, 120), outb.shape
    assert jnp.max(jnp.abs(outb - refb)) < 1e-1, float(jnp.max(jnp.abs(outb - refb)))

    # Test 3: B=1 (exercises the >=2-grid-step clamp for v7x's 2 TensorCores).
    im1c = jax.random.normal(k5, (1, 2, 64, 64), dtype=jnp.float32)
    im2c = jax.random.normal(k6, (1, 2, 64, 64), dtype=jnp.float32)
    outc = jax.block_until_ready(loss_sam3(im1c, im2c))
    refc = jax.block_until_ready(_reference_sam(im1c, im2c))
    assert outc.shape == (1, 4096), outc.shape
    assert jnp.max(jnp.abs(outc - refc)) < 1e-2, float(jnp.max(jnp.abs(outc - refc)))

    print("KERNEL_OK")
</pallas_src>

<mosaic_0001>
module attributes {stable_mosaic.version = 11 : i64} {
  func.func @_sam_kernel_4d(%arg0: i32, %arg1: i32, %arg2: memref<1x4x2x128xf32, #tpu.memory_space<vmem>>, %arg3: memref<1x4x2x128xf32, #tpu.memory_space<vmem>>, %arg4: memref<1x2x128xf32, #tpu.memory_space<vmem>>) attributes {dimension_semantics = [#tpu.dimension_semantics<parallel>, #tpu.dimension_semantics<parallel>], iteration_bounds = array<i64: 2, 1>, scalar_prefetch = 0 : i64, scratch_operands = 0 : i64, tpu.core_type = #tpu.core_type<tc>, window_params = [{transform_indices = @transform_0, window_bounds = array<i64: 1, 4, 2, 128>}, {transform_indices = @transform_1, window_bounds = array<i64: 1, 4, 2, 128>}, {transform_indices = @transform_2, window_bounds = array<i64: 1, 2, 128>}]} {
    %c0 = arith.constant 0 : index
    %c0_0 = arith.constant 0 : index
    %c0_1 = arith.constant 0 : index
    %c0_2 = arith.constant 0 : index
    %0 = vector.load %arg2[%c0, %c0_0, %c0_1, %c0_2] : memref<1x4x2x128xf32, #tpu.memory_space<vmem>>, vector<1x1x2x128xf32>
    %1 = vector.shape_cast %0 : vector<1x1x2x128xf32> to vector<2x128xf32>
    %c0_3 = arith.constant 0 : index
    %c0_4 = arith.constant 0 : index
    %c0_5 = arith.constant 0 : index
    %c0_6 = arith.constant 0 : index
    %2 = vector.load %arg3[%c0_3, %c0_4, %c0_5, %c0_6] : memref<1x4x2x128xf32, #tpu.memory_space<vmem>>, vector<1x1x2x128xf32>
    %3 = vector.shape_cast %2 : vector<1x1x2x128xf32> to vector<2x128xf32>
    %4 = arith.mulf %1, %3 : vector<2x128xf32>
    %5 = arith.mulf %1, %1 : vector<2x128xf32>
    %6 = arith.mulf %3, %3 : vector<2x128xf32>
    %c0_7 = arith.constant 0 : index
    %c1 = arith.constant 1 : index
    %c0_8 = arith.constant 0 : index
    %c0_9 = arith.constant 0 : index
    %7 = vector.load %arg2[%c0_7, %c1, %c0_8, %c0_9] : memref<1x4x2x128xf32, #tpu.memory_space<vmem>>, vector<1x1x2x128xf32>
    %8 = vector.shape_cast %7 : vector<1x1x2x128xf32> to vector<2x128xf32>
    %c0_10 = arith.constant 0 : index
    %c1_11 = arith.constant 1 : index
    %c0_12 = arith.constant 0 : index
    %c0_13 = arith.constant 0 : index
    %9 = vector.load %arg3[%c0_10, %c1_11, %c0_12, %c0_13] : memref<1x4x2x128xf32, #tpu.memory_space<vmem>>, vector<1x1x2x128xf32>
    %10 = vector.shape_cast %9 : vector<1x1x2x128xf32> to vector<2x128xf32>
    %11 = arith.mulf %8, %10 : vector<2x128xf32>
    %12 = arith.addf %4, %11 : vector<2x128xf32>
    %13 = arith.mulf %8, %8 : vector<2x128xf32>
    %14 = arith.addf %5, %13 : vector<2x128xf32>
    %15 = arith.mulf %10, %10 : vector<2x128xf32>
    %16 = arith.addf %6, %15 : vector<2x128xf32>
    %c0_14 = arith.constant 0 : index
    %c2 = arith.constant 2 : index
    %c0_15 = arith.constant 0 : index
    %c0_16 = arith.constant 0 : index
    %17 = vector.load %arg2[%c0_14, %c2, %c0_15, %c0_16] : memref<1x4x2x128xf32, #tpu.memory_space<vmem>>, vector<1x1x2x128xf32>
    %18 = vector.shape_cast %17 : vector<1x1x2x128xf32> to vector<2x128xf32>
    %c0_17 = arith.constant 0 : index
    %c2_18 = arith.constant 2 : index
    %c0_19 = arith.constant 0 : index
    %c0_20 = arith.constant 0 : index
    %19 = vector.load %arg3[%c0_17, %c2_18, %c0_19, %c0_20] : memref<1x4x2x128xf32, #tpu.memory_space<vmem>>, vector<1x1x2x128xf32>
    %20 = vector.shape_cast %19 : vector<1x1x2x128xf32> to vector<2x128xf32>
    %21 = arith.mulf %18, %20 : vector<2x128xf32>
    %22 = arith.addf %12, %21 : vector<2x128xf32>
    %23 = arith.mulf %18, %18 : vector<2x128xf32>
    %24 = arith.addf %14, %23 : vector<2x128xf32>
    %25 = arith.mulf %20, %20 : vector<2x128xf32>
    %26 = arith.addf %16, %25 : vector<2x128xf32>
    %c0_21 = arith.constant 0 : index
    %c3 = arith.constant 3 : index
    %c0_22 = arith.constant 0 : index
    %c0_23 = arith.constant 0 : index
    %27 = vector.load %arg2[%c0_21, %c3, %c0_22, %c0_23] : memref<1x4x2x128xf32, #tpu.memory_space<vmem>>, vector<1x1x2x128xf32>
    %28 = vector.shape_cast %27 : vector<1x1x2x128xf32> to vector<2x128xf32>
    %c0_24 = arith.constant 0 : index
    %c3_25 = arith.constant 3 : index
    %c0_26 = arith.constant 0 : index
    %c0_27 = arith.constant 0 : index
    %29 = vector.load %arg3[%c0_24, %c3_25, %c0_26, %c0_27] : memref<1x4x2x128xf32, #tpu.memory_space<vmem>>, vector<1x1x2x128xf32>
    %30 = vector.shape_cast %29 : vector<1x1x2x128xf32> to vector<2x128xf32>
    %31 = arith.mulf %28, %30 : vector<2x128xf32>
    %32 = arith.addf %22, %31 : vector<2x128xf32>
    %33 = arith.mulf %28, %28 : vector<2x128xf32>
    %34 = arith.addf %24, %33 : vector<2x128xf32>
    %35 = arith.mulf %30, %30 : vector<2x128xf32>
    %36 = arith.addf %26, %35 : vector<2x128xf32>
    %37 = math.sqrt %34 : vector<2x128xf32>
    %38 = math.sqrt %36 : vector<2x128xf32>
    %39 = arith.mulf %37, %38 : vector<2x128xf32>
    %cst = arith.constant 2.220400e-16 : f32
    %40 = vector.broadcast %cst : f32 to vector<2x128xf32>
    %41 = arith.addf %32, %40 : vector<2x128xf32>
    %cst_28 = arith.constant 2.220400e-16 : f32
    %42 = vector.broadcast %cst_28 : f32 to vector<2x128xf32>
    %43 = arith.addf %39, %42 : vector<2x128xf32>
    %44 = arith.divf %41, %43 : vector<2x128xf32>
    %cst_29 = arith.constant -1.000000e+00 : f32
    %cst_30 = arith.constant 1.000000e+00 : f32
    %45 = vector.broadcast %cst_29 : f32 to vector<2x128xf32>
    %46 = arith.maximumf %45, %44 : vector<2x128xf32>
    %47 = vector.broadcast %cst_30 : f32 to vector<2x128xf32>
    %48 = arith.minimumf %47, %46 : vector<2x128xf32>
    %49 = math.absf %48 : vector<2x128xf32>
    %cst_31 = arith.constant -0.0012624911 : f32
    %50 = vector.broadcast %cst_31 : f32 to vector<2x128xf32>
    %51 = arith.mulf %50, %49 : vector<2x128xf32>
    %cst_32 = arith.constant 6.670090e-03 : f32
    %52 = vector.broadcast %cst_32 : f32 to vector<2x128xf32>
    %53 = arith.addf %51, %52 : vector<2x128xf32>
    %54 = arith.mulf %53, %49 : vector<2x128xf32>
    %cst_33 = arith.constant -0.0170881264 : f32
    %55 = vector.broadcast %cst_33 : f32 to vector<2x128xf32>
    %56 = arith.addf %54, %55 : vector<2x128xf32>
    %57 = arith.mulf %56, %49 : vector<2x128xf32>
    %cst_34 = arith.constant 0.0308918804 : f32
    %58 = vector.broadcast %cst_34 : f32 to vector<2x128xf32>
    %59 = arith.addf %57, %58 : vector<2x128xf32>
    %60 = arith.mulf %59, %49 : vector<2x128xf32>
    %cst_35 = arith.constant -0.0501743034 : f32
    %61 = vector.broadcast %cst_35 : f32 to vector<2x128xf32>
    %62 = arith.addf %60, %61 : vector<2x128xf32>
    %63 = arith.mulf %62, %49 : vector<2x128xf32>
    %cst_36 = arith.constant 0.0889789909 : f32
    %64 = vector.broadcast %cst_36 : f32 to vector<2x128xf32>
    %65 = arith.addf %63, %64 : vector<2x128xf32>
    %66 = arith.mulf %65, %49 : vector<2x128xf32>
    %cst_37 = arith.constant -0.214598805 : f32
    %67 = vector.broadcast %cst_37 : f32 to vector<2x128xf32>
    %68 = arith.addf %66, %67 : vector<2x128xf32>
    %69 = arith.mulf %68, %49 : vector<2x128xf32>
    %cst_38 = arith.constant 1.57079625 : f32
    %70 = vector.broadcast %cst_38 : f32 to vector<2x128xf32>
    %71 = arith.addf %69, %70 : vector<2x128xf32>
    %cst_39 = arith.constant 1.000000e+00 : f32
    %72 = vector.broadcast %cst_39 : f32 to vector<2x128xf32>
    %73 = arith.subf %72, %49 : vector<2x128xf32>
    %74 = math.sqrt %73 : vector<2x128xf32>
    %75 = arith.mulf %74, %71 : vector<2x128xf32>
    %cst_40 = arith.constant 0.000000e+00 : f32
    %76 = vector.broadcast %cst_40 : f32 to vector<2x128xf32>
    %77 = arith.cmpf olt, %48, %76 : vector<2x128xf32>
    %cst_41 = arith.constant 3.14159274 : f32
    %78 = vector.broadcast %cst_41 : f32 to vector<2x128xf32>
    %79 = arith.subf %78, %75 : vector<2x128xf32>
    %80 = arith.select %77, %79, %75 : vector<2x128xi1>, vector<2x128xf32>
    %cst_42 = arith.constant 57.2957802 : f32
    %81 = vector.broadcast %cst_42 : f32 to vector<2x128xf32>
    %82 = arith.mulf %80, %81 : vector<2x128xf32>
    %c0_43 = arith.constant 0 : index
    %c0_44 = arith.constant 0 : index
    %c0_45 = arith.constant 0 : index
    %83 = vector.load %arg4[%c0_43, %c0_44, %c0_45] : memref<1x2x128xf32, #tpu.memory_space<vmem>>, vector<1x2x128xf32>
    %84 = vector.shape_cast %83 : vector<1x2x128xf32> to vector<2x128xf32>
    %85 = vector.shape_cast %82 : vector<2x128xf32> to vector<1x2x128xf32>
    tpu.vector_store %arg4[%c0_43, %c0_44, %c0_45], %85 {strides = array<i32>} : memref<1x2x128xf32, #tpu.memory_space<vmem>>, vector<1x2x128xf32>,
    return
  }
  func.func @transform_0(%arg0: i32, %arg1: i32) -> (i32, i32, i32, i32) {
    %c0_i32 = arith.constant 0 : i32
    %c0_i32_0 = arith.constant 0 : i32
    %c0_i32_1 = arith.constant 0 : i32
    return %arg0, %c0_i32, %arg1, %c0_i32_0 : i32, i32, i32, i32
  }
  func.func @transform_1(%arg0: i32, %arg1: i32) -> (i32, i32, i32, i32) {
    %c0_i32 = arith.constant 0 : i32
    %c0_i32_0 = arith.constant 0 : i32
    %c0_i32_1 = arith.constant 0 : i32
    return %arg0, %c0_i32, %arg1, %c0_i32_0 : i32, i32, i32, i32
  }
  func.func @transform_2(%arg0: i32, %arg1: i32) -> (i32, i32, i32) {
    %c0_i32 = arith.constant 0 : i32
    %c0_i32_0 = arith.constant 0 : i32
    return %arg0, %arg1, %c0_i32 : i32, i32, i32
  }
}

</mosaic_0001>

<llo_original>
// kernel: loss_sam3.1
$region0: #{loss_sam3.1}
  #allocation0 [shape = 'u32[]', space=smem, size = 0x4, offset = 0x4, fixed_abs, tag = 'smem constant byte address 0x4 - core index']
  #allocation1 [shape = 'u32[144,128]{1,0:T(1,128)}', space=vmem, size = 0x12000, scoped, tag = 'internal scratch']
  %s0 = inlined_call_operand.vmem [shape: f32[2,4,2,128], index: 0, kind: input, shape index: {}]
  %s1 = inlined_call_operand.vmem [shape: f32[2,4,2,128], index: 1, kind: input, shape index: {}]
  %s2 = inlined_call_operand.vmem [shape: f32[2,2,128], index: 2, kind: output, shape index: {}]
  %s3 = sld [smem:[#allocation0]]
  $region41: #{loss_sam3.1} parent=0
    _
  %s5 = ssub.s32 1, %s3
  %s6 = scalar_select 0, %s5, %s3
  loop: start=0, step=1, limit=4
  $region2: #{loss_sam3.1} parent=0 // loop_pre_header
    _
  $region3: #{loss_sam3.1} parent=0 // loop_header
    %s8 = sphi 0, %s12
    %p9 = scmp.ge.s32.totalorder %s8, 4
    %s15 = sphi 0, %s27
    %s16 = sphi 0, %s23
    %s17 = sphi 0, %s15
    %s18 = sphi 0, %s16
    %s19 = sphi 0, %s17
    %s20 = sphi 0, %s18
    %s32 = sphi 0, %s34
    %s35 = sphi 0, %s32
    %s36 = sphi 0, %s35
    %s52 = sphi 0, %s36
    %s60 = sphi 0, %s62
    %s63 = sphi 0, %s60
    %s64 = sphi 0, %s63
    %s80 = sphi 0, %s64
    %s88 = sphi 0, %s90
    %s91 = sphi 0, %s88
    %s92 = sphi 0, %s91
    %s108 = sphi 0, %s92
  $region4: #{loss_sam3.1} parent=0 // loop_header_branch
    %11 = sbr.rel (%p9) target = $region8
  $region5: #{loss_sam3.1} parent=0 // loop_body
    %s13 = ssub.s32 %s8, 1
    %s14 = ssub.s32 %s8, 2
    %s21 = sadd.s32 1, %s16
    %p22 = scmp.ge.s32.totalorder %s21, 1
    %s23 = scalar_select %p22, 0, %s21
    %s24 = sadd.s32 1, %s15
    %s25 = scalar_select %p22, %s24, %s15
    %p26 = scmp.ge.s32.totalorder %s25, 2
    %s27 = scalar_select %p26, 0, %s25
    %s28 = ssub.s32 %s15, %s27
    %s29 = ssub.s32 %s16, %s23
    %s30 = sor.u32 %s28, %s29
    %p31 = scmp.eq.s32.totalorder %s30, 0
    %s33 = sadd.s32 %s32, 1
    %s34 = scalar_select %p31, %s32, %s33
    %p37 = pneg %p31
    %p38 = scmp.eq.s32.totalorder %s8, 1
    %p39 = por %p37, %p38
    %p40 = scmp.ne.s32.totalorder %s32, %s35
    %p41 = scmp.eq.s32.totalorder %s8, 0
    %p42 = por %p40, %p41
    %p43 = scmp.ne.s32.totalorder %s32, %s35
    %p44 = scmp.eq.s32.totalorder %s13, 1
    %p45 = por %p43, %p44
    %p46 = scmp.ne.s32.totalorder %s35, %s36
    %p47 = scmp.eq.s32.totalorder %s13, 0
    %p48 = por %p46, %p47
    %p49 = scmp.ne.s32.totalorder %s35, %s36
    %p50 = scmp.eq.s32.totalorder %s14, 1
    %p51 = por %p49, %p50
    %p53 = scmp.ne.s32.totalorder %s36, %s52
    %p54 = scmp.eq.s32.totalorder %s14, 0
    %p55 = por %p53, %p54
    %s56 = ssub.s32 %s15, %s27
    %s57 = ssub.s32 %s16, %s23
    %s58 = sor.u32 %s56, %s57
    %p59 = scmp.eq.s32.totalorder %s58, 0
    %s61 = sadd.s32 %s60, 1
    %s62 = scalar_select %p59, %s60, %s61
    %p65 = pneg %p59
    %p66 = scmp.eq.s32.totalorder %s8, 1
    %p67 = por %p65, %p66
    %p68 = scmp.ne.s32.totalorder %s60, %s63
    %p69 = scmp.eq.s32.totalorder %s8, 0
    %p70 = por %p68, %p69
    %p71 = scmp.ne.s32.totalorder %s60, %s63
    %p72 = scmp.eq.s32.totalorder %s13, 1
    %p73 = por %p71, %p72
    %p74 = scmp.ne.s32.totalorder %s63, %s64
    %p75 = scmp.eq.s32.totalorder %s13, 0
    %p76 = por %p74, %p75
    %p77 = scmp.ne.s32.totalorder %s63, %s64
    %p78 = scmp.eq.s32.totalorder %s14, 1
    %p79 = por %p77, %p78
    %p81 = scmp.ne.s32.totalorder %s64, %s80
    %p82 = scmp.eq.s32.totalorder %s14, 0
    %p83 = por %p81, %p82
    %s84 = ssub.s32 %s15, %s27
    %s85 = ssub.s32 %s16, %s23
    %s86 = sor.u32 %s84, %s85
    %p87 = scmp.eq.s32.totalorder %s86, 0
    %s89 = sadd.s32 %s88, 1
    %s90 = scalar_select %p87, %s88, %s89
    %p93 = pneg %p87
    %p94 = scmp.eq.s32.totalorder %s8, 1
    %p95 = por %p93, %p94
    %p96 = scmp.ne.s32.totalorder %s88, %s91
    %p97 = scmp.eq.s32.totalorder %s8, 0
    %p98 = por %p96, %p97
    %p99 = scmp.ne.s32.totalorder %s88, %s91
    %p100 = scmp.eq.s32.totalorder %s13, 1
    %p101 = por %p99, %p100
    %p102 = scmp.ne.s32.totalorder %s91, %s92
    %p103 = scmp.eq.s32.totalorder %s13, 0
    %p104 = por %p102, %p103
    %p105 = scmp.ne.s32.totalorder %s91, %s92
    %p106 = scmp.eq.s32.totalorder %s14, 1
    %p107 = por %p105, %p106
    %p109 = scmp.ne.s32.totalorder %s92, %s108
    %p110 = scmp.eq.s32.totalorder %s14, 0
    %p111 = por %p109, %p110
    %p112 = scmp.le.s32.totalorder 1, %s8
    %p113 = scmp.lt.s32.totalorder %s8, 3
    %p114 = pnand %p112, %p113
    %p115 = pneg %p114
    // Predicated region
    $region9: #{loss_sam3.1} parent=5 // pred_check
      _
    $region10: #{loss_sam3.1} parent=5 // pred_check_branch
      %117 = sbr.rel (%p114) target = $region12
    $region11: #{loss_sam3.1} parent=5 // pred_region
      %s118 = ssub.s32 %s8, 1
    $region12: #{loss_sam3.1} parent=5 // pred_fallthru
      _
    %p119 = scmp.lt.s32.totalorder %s8, 2
    // Predicated region
    $region13: #{loss_sam3.1} parent=5 // pred_check
      %p120 = pneg %p119
    $region14: #{loss_sam3.1} parent=5 // pred_check_branch
      %122 = sbr.rel (%p120) target = $region16
    $region15: #{loss_sam3.1} parent=5 // pred_region
      // Predicated region
      $region17: #{loss_sam3.1} parent=15 // pred_check
        %p123 = pneg %p42
      $region18: #{loss_sam3.1} parent=15 // pred_check_branch
        %125 = sbr.rel (%p123) target = $region20
      $region19: #{loss_sam3.1} parent=15 // pred_region
        %p126 = scmp.lt.s32.totalorder %s15, 1
        %s127 = scalar_select %p126, %s15, 1
        %p128 = scmp.lt.s32.totalorder %s16, 0
        %s129 = scalar_select %p128, %s16, 0
        %s130 = smul.addr %s127, 4
        %s131 = sadd.s32 %s129, %s130
        %s132 = smul.addr %s131, 2
        %s133 = scalar_lea.vmem %s0, %s132
      $region20: #{loss_sam3.1} parent=15 // pred_fallthru
        _
      // Predicated region
      $region21: #{loss_sam3.1} parent=15 // pred_check
        %p134 = pneg %p70
      $region22: #{loss_sam3.1} parent=15 // pred_check_branch
        %136 = sbr.rel (%p134) target = $region24
      $region23: #{loss_sam3.1} parent=15 // pred_region
        %p137 = scmp.lt.s32.totalorder %s15, 1
        %s138 = scalar_select %p137, %s15, 1
        %p139 = scmp.lt.s32.totalorder %s16, 0
        %s140 = scalar_select %p139, %s16, 0
        %s141 = smul.addr %s138, 4
        %s142 = sadd.s32 %s140, %s141
        %s143 = smul.addr %s142, 2
        %s144 = scalar_lea.vmem %s1, %s143
      $region24: #{loss_sam3.1} parent=15 // pred_fallthru
        _
    $region16: #{loss_sam3.1} parent=5 // pred_fallthru
      _
    %p145 = scmp.le.s32.totalorder 1, %s8
    %p146 = scmp.lt.s32.totalorder %s8, 3
    %p147 = pnand %p145, %p146
    %p148 = pneg %p147
    // Predicated region
    $region25: #{loss_sam3.1} parent=5 // pred_check
      _
    $region26: #{loss_sam3.1} parent=5 // pred_check_branch
      %150 = sbr.rel (%p147) target = $region28
    $region27: #{loss_sam3.1} parent=5 // pred_region
      %s151 = ssub.s32 %s8, 1
      %p152 = scmp.lt.s32.totalorder %s17, 1
      %s153 = scalar_select %p152, %s17, 1
      %p154 = scmp.lt.s32.totalorder %s18, 0
      %s155 = scalar_select %p154, %s18, 0
      %s156 = smul.addr %s153, 4
      %s157 = sadd.s32 %s155, %s156
      %s158 = smul.addr %s157, 2
      %s159 = scalar_lea.vmem %s0, %s158
      %p160 = pneg %p48
      %p161 = pneg %p45
      %p162 = scmp.lt.s32.totalorder %s17, 1
      %s163 = scalar_select %p162, %s17, 1
      %p164 = scmp.lt.s32.totalorder %s18, 0
      %s165 = scalar_select %p164, %s18, 0
      %s166 = smul.addr %s163, 4
      %s167 = sadd.s32 %s165, %s166
      %s168 = smul.addr %s167, 2
      %s169 = scalar_lea.vmem %s1, %s168
      %p170 = pneg %p76
      %p171 = pneg %p73
      %p172 = pneg %p104
      %p173 = pneg %p101
      %p174 = scmp.lt.s32.totalorder %s17, 1
      %s175 = scalar_select %p174, %s17, 1
      %p176 = scmp.lt.s32.totalorder %s18, 0
      %s177 = scalar_select %p176, %s18, 0
      %s178 = sadd.s32 %s177, %s175
      %s179 = smul.addr %s178, 2
      %s180 = scalar_lea.vmem %s2, %s179
      %p181 = scmp.lt.s32.totalorder %s17, 1
      %s182 = scalar_select %p181, %s17, 1
      %p183 = scmp.lt.s32.totalorder %s18, 0
      %s184 = scalar_select %p183, %s18, 0
      %s185 = smul.addr %s182, 4
      %s186 = sadd.s32 %s184, %s185
      %s187 = smul.addr %s186, 2
      %s188 = scalar_lea.vmem %s0, %s187
      %p189 = scmp.lt.s32.totalorder %s17, 1
      %s190 = scalar_select %p189, %s17, 1
      %p191 = scmp.lt.s32.totalorder %s18, 0
      %s192 = scalar_select %p191, %s18, 0
      %s193 = smul.addr %s190, 4
      %s194 = sadd.s32 %s192, %s193
      %s195 = smul.addr %s194, 2
      %s196 = scalar_lea.vmem %s1, %s195
      %p197 = scmp.lt.s32.totalorder %s17, 1
      %s198 = scalar_select %p197, %s17, 1
      %p199 = scmp.lt.s32.totalorder %s18, 0
      %s200 = scalar_select %p199, %s18, 0
      %s201 = sadd.s32 %s200, %s198
      %s202 = smul.addr %s201, 2
      %s203 = scalar_lea.vmem %s2, %s202
      %v204 = vld [vmem:[%s188] sm:$0x3]
      %v205 = vld [vmem:[%s196] sm:$0x3]
      %v206 = vmul.f32 %v204, %v205
      %v207 = vmul.f32 %v204, %v204
      %v208 = vmul.f32 %v205, %v205
      %s209 = scalar_lea.vmem %s188, 2
      %v210 = vld [vmem:[%s209] sm:$0x3]
      %s211 = scalar_lea.vmem %s196, 2
      %v212 = vld [vmem:[%s211] sm:$0x3]
      %v213 = vmul.f32 %v210, %v212
      %v214 = vadd.f32 %v206, %v213
      %v215 = vmul.f32 %v210, %v210
      %v216 = vadd.f32 %v207, %v215
      %v217 = vmul.f32 %v212, %v212
      %v218 = vadd.f32 %v208, %v217
      %s219 = scalar_lea.vmem %s188, 4
      %v220 = vld [vmem:[%s219] sm:$0x3]
      %s221 = scalar_lea.vmem %s196, 4
      %v222 = vld [vmem:[%s221] sm:$0x3]
      %v223 = vmul.f32 %v220, %v222
      %v224 = vadd.f32 %v214, %v223
      %v225 = vmul.f32 %v220, %v220
      %v226 = vadd.f32 %v216, %v225
      %v227 = vmul.f32 %v222, %v222
      %v228 = vadd.f32 %v218, %v227
      %s229 = scalar_lea.vmem %s188, 6
      %v230 = vld [vmem:[%s229] sm:$0x3]
      %s231 = scalar_lea.vmem %s196, 6
      %v232 = vld [vmem:[%s231] sm:$0x3]
      %v233 = vmul.f32 %v230, %v232
      %v234 = vadd.f32 %v224, %v233
      %v235 = vmul.f32 %v230, %v230
      %v236 = vadd.f32 %v226, %v235
      %v237 = vmul.f32 %v232, %v232
      %v238 = vadd.f32 %v228, %v237
      %v239 = vrsqrt.pop %v236
      %v240 = vmul.f32 %v236, %v239
      %vm241 = vcmp.eq.f32.partialorder %v236, inf
      %v242 = vsel %vm241, %v236, %v240
      %vm243 = vcmp.eq.f32.partialorder %v236, 0.0
      %v244 = vand.u32 %v236, 2147483648
      %v245 = vsel %vm243, %v244, %v242
      %v246 = vrsqrt.pop %v238
      %v247 = vmul.f32 %v238, %v246
      %vm248 = vcmp.eq.f32.partialorder %v238, inf
      %v249 = vsel %vm248, %v238, %v247
      %vm250 = vcmp.eq.f32.partialorder %v238, 0.0
      %v251 = vand.u32 %v238, 2147483648
      %v252 = vsel %vm250, %v251, %v249
      %v253 = vmul.f32 %v245, %v252
      %v254 = vadd.f32 %v234, 2.2204e-16
      %v255 = vadd.f32 %v253, 2.2204e-16
      %v256 = vrcp.pop %v255
      %v257 = vmul.f32 %v254, %v256
      %v258 = vmax.f32 %v257, -1.0
      %v259 = vmin.f32 %v258, 1.0
      %v260 = vand.u32 2147483647, %v259
      %v261 = vmul.f32 %v260, -0.0012624911
      %v262 = vadd.f32 %v261, 0.00667009
      %v263 = vmul.f32 %v262, %v260
      %v264 = vadd.f32 %v263, -0.017088126
      %v265 = vmul.f32 %v264, %v260
      %v266 = vadd.f32 %v265, 0.03089188
      %v267 = vmul.f32 %v266, %v260
      %v268 = vadd.f32 %v267, -0.050174303
      %v269 = vmul.f32 %v268, %v260
      %v270 = vadd.f32 %v269, 0.08897899
      %v271 = vmul.f32 %v270, %v260
      %v272 = vadd.f32 %v271, -0.2145988
      %v273 = vmul.f32 %v272, %v260
      %v274 = vadd.f32 %v273, 1.5707963
      %v275 = vsub.f32 1.0, %v260
      %v276 = vrsqrt.pop %v275
      %v277 = vmul.f32 %v275, %v276
      %vm278 = vcmp.eq.f32.partialorder %v275, inf
      %v279 = vsel %vm278, %v275, %v277
      %vm280 = vcmp.eq.f32.partialorder %v275, 0.0
      %v281 = vand.u32 %v275, 2147483648
      %v282 = vsel %vm280, %v281, %v279
      %v283 = vmul.f32 %v282, %v274
      %vm284 = vcmp.lt.f32.partialorder %v259, 0.0
      %v285 = vsub.f32 3.1415927, %v283
      %v286 = vsel %vm284, %v285, %v283
      %v287 = vmul.f32 %v286, 57.29578
      %288 = vst [vmem:[%s203] sm:$0x3] %v287
      %p289 = scmp.lt.s32.totalorder %s17, 1
      %s290 = scalar_select %p289, %s17, 1
      %p291 = scmp.lt.s32.totalorder %s18, 0
      %s292 = scalar_select %p291, %s18, 0
      %s293 = sadd.s32 %s292, %s290
      %s294 = smul.addr %s293, 2
      %s295 = scalar_lea.vmem %s2, %s294
      // Predicated region
      $region29: #{loss_sam3.1} parent=27 // pred_check
        %p296 = pneg %p101
      $region30: #{loss_sam3.1} parent=27 // pred_check_branch
        %298 = sbr.rel (%p296) target = $region32
      $region31: #{loss_sam3.1} parent=27 // pred_region
        _
      $region32: #{loss_sam3.1} parent=27 // pred_fallthru
        _
    $region28: #{loss_sam3.1} parent=5 // pred_fallthru
      _
    %p299 = scmp.le.s32.totalorder 2, %s8
    // Predicated region
    $region33: #{loss_sam3.1} parent=5 // pred_check
      %p300 = pneg %p299
    $region34: #{loss_sam3.1} parent=5 // pred_check_branch
      %302 = sbr.rel (%p300) target = $region36
    $region35: #{loss_sam3.1} parent=5 // pred_region
      %s303 = ssub.s32 %s8, 2
      // Predicated region
      $region37: #{loss_sam3.1} parent=35 // pred_check
        %p304 = pneg %p107
      $region38: #{loss_sam3.1} parent=35 // pred_check_branch
        %306 = sbr.rel (%p304) target = $region40
      $region39: #{loss_sam3.1} parent=35 // pred_region
        %p307 = scmp.lt.s32.totalorder %s19, 1
        %s308 = scalar_select %p307, %s19, 1
        %p309 = scmp.lt.s32.totalorder %s20, 0
        %s310 = scalar_select %p309, %s20, 0
        %s311 = sadd.s32 %s310, %s308
        %s312 = smul.addr %s311, 2
        %s313 = scalar_lea.vmem %s2, %s312
      $region40: #{loss_sam3.1} parent=35 // pred_fallthru
        _
    $region36: #{loss_sam3.1} parent=5 // pred_fallthru
      _
  $region6: #{loss_sam3.1} parent=0 // loop_footer
    %s12 = sadd.s32 1, %s8
  $region7: #{loss_sam3.1} parent=0 // loop_footer_branch
    %7 = sbr.rel target = $region3
  $region8: #{loss_sam3.1} parent=0 // loop_exit
    _

</llo_original>
